<compile_context>
chip_gen: v6e
topology: v6e:2x2x1
jax: 0.10.0
libtpu: 0.0.40
codegen_flags: <defaults>
</compile_context>

<pallas_src>
import functools
import math

import jax
import jax.numpy as jnp
from jax.experimental import pallas as pl
from jax.experimental.pallas import tpu as pltpu

LN_EPS = 1e-5


def _round_up(v, m):
    return ((v + m - 1) // m) * m


def _vmem_capacity_bytes():
    # Per-TensorCore VMEM (v5e/v6e: 128 MiB, v7x: 64 MiB). Conservative fallback.
    try:
        return int(pltpu.get_tpu_info().vmem_capacity_bytes)
    except Exception:
        return 64 << 20


def _select_tile_m(m, k, c_pad, out_itemsize, vmem_capacity):
    """Largest row tile (multiple of 8, <= 1024) whose double-buffered in/out
    tiles fit comfortably in VMEM, while keeping >= 2 grid steps when M allows
    (so the 'parallel' M axis can shard across both TensorCores on 2-TC chips)."""
    bytes_per_row = 2 * (k * 2 + c_pad * out_itemsize)      # 2 buffers x (bf16 in + out)
    budget = min(vmem_capacity // 3, 24 << 20)
    tm = max(8, min(1024, (budget // bytes_per_row) // 8 * 8))
    if m > 8:
        tm = min(tm, _round_up(-(-m // 2), 8))               # >= 2 grid steps
    return min(tm, _round_up(m, 8))


# -----------------------------------------------------------------------------
# Pallas kernel: one M-tile of fused (patches @ W + b) + LayerNorm(last dim).
# -----------------------------------------------------------------------------
def _proj_ln_kernel(p_ref, w_ref, prm_ref, o_ref, *, c_true, c_pad):
    # p_ref:   (TM, K)  bf16  im2col patch rows (K unpadded)
    # w_ref:   (K, Cp)  bf16  conv weight, (kh, kw, cin) x C layout (C zero-padded)
    # prm_ref: (8, Cp)  f32   rows: 0=conv bias, 1=LN gamma, 2=LN beta, 3=lane mask
    # o_ref:   (TM, Cp)       lane-dense output tile
    y = jnp.dot(p_ref[...], w_ref[...], preferred_element_type=jnp.float32)
    y = y + prm_ref[0:1, :]                       # padded lanes stay exactly 0
    inv_c = jnp.float32(1.0 / c_true)
    mean = jnp.sum(y, axis=-1, keepdims=True) * inv_c
    if c_pad == c_true:
        diff = y - mean
    else:
        diff = y - mean * prm_ref[3:4, :]         # resident mask keeps padded lanes at 0
    var = jnp.sum(diff * diff, axis=-1, keepdims=True) * inv_c   # biased, like torch LN
    y_hat = diff * jax.lax.rsqrt(var + LN_EPS)
    o_ref[...] = (y_hat * prm_ref[1:2, :] + prm_ref[2:3, :]).astype(o_ref.dtype)


# -----------------------------------------------------------------------------
# Plain-JAX glue: NHWC strided-slice im2col computed directly in bf16.
# Patch feature order is (kh, kw, cin).
# -----------------------------------------------------------------------------
def _im2col_bf16(x_nchw, kh, kw, stride, pad):
    B, Cin, H, W = x_nchw.shape
    Hout = (H + 2 * pad - kh) // stride + 1
    Wout = (W + 2 * pad - kw) // stride + 1
    x = jnp.transpose(x_nchw.astype(jnp.bfloat16), (0, 2, 3, 1))      # NHWC, bf16
    xp = jnp.pad(x, ((0, 0), (pad, pad), (pad, pad), (0, 0)))
    cols = []
    for ih in range(kh):
        for iw in range(kw):
            s = jax.lax.slice(
                xp,
                (0, ih, iw, 0),
                (B, ih + stride * (Hout - 1) + 1, iw + stride * (Wout - 1) + 1, Cin),
                (1, stride, stride, 1),
            )                                                          # (B, Hout, Wout, Cin)
            cols.append(s)
    patches = jnp.concatenate(cols, axis=-1)                           # (B, Hout, Wout, K) bf16
    return patches, Hout, Wout


def overlap_patch_embed(x, conv_w, conv_b, ln_w, ln_b, *, patch_size, stride,
                        out_dtype=jnp.float32):
    """x: (B, Cin, H, W).  Returns (B, C, sqrt(N), sqrt(N)) in `out_dtype`."""
    B, Cin, H, W = x.shape
    C = conv_w.shape[0]
    pad = patch_size // 2

    patches, Hout, Wout = _im2col_bf16(x, patch_size, patch_size, stride, pad)
    N = Hout * Wout
    M = B * N
    K = patch_size * patch_size * Cin

    # Lane padding of the embedding dim only when needed (C = 128/256/512 -> none).
    Cp = C if C % 128 == 0 else _round_up(C, 128)

    # Collapsing leading dims is a free (layout-preserving) reshape.
    p2d = patches.reshape(M, K)

    # conv weight (C, Cin, kh, kw) -> (kh, kw, Cin, C) to match patch feature order.
    w2d = jnp.transpose(conv_w.astype(jnp.bfloat16), (2, 3, 1, 0)).reshape(K, C)
    if Cp != C:
        w2d = jnp.pad(w2d, ((0, 0), (0, Cp - C)))

    # Merged resident params: rows = [conv bias, LN gamma, LN beta, valid-lane mask].
    prm = jnp.stack(
        [conv_b.astype(jnp.float32), ln_w.astype(jnp.float32),
         ln_b.astype(jnp.float32), jnp.ones((C,), jnp.float32)], axis=0)
    prm = jnp.pad(prm, ((0, 8 - prm.shape[0]), (0, Cp - C)))           # (8, Cp)

    out_itemsize = jnp.dtype(out_dtype).itemsize
    vmem_cap = _vmem_capacity_bytes()
    TM = _select_tile_m(M, K, Cp, out_itemsize, vmem_cap)
    grid = (pl.cdiv(M, TM),)

    # VMEM budget: double-buffered patch/out tiles + (default double-buffered)
    # resident weight & params, plus headroom; capped against physical capacity.
    tile_bytes = TM * K * 2 + TM * Cp * out_itemsize
    resident_bytes = K * Cp * 2 + 8 * Cp * 4
    vmem_need = 2 * (tile_bytes + resident_bytes)
    vmem_limit = int(min(max(vmem_need + vmem_need // 2 + (4 << 20), 16 << 20),
                         (vmem_cap * 3) // 4))

    cost = pl.CostEstimate(
        flops=2 * M * K * Cp,
        transcendentals=M,
        bytes_accessed=M * K * 2 + K * Cp * 2 + M * Cp * out_itemsize + 8 * Cp * 4,
    )

    y = pl.pallas_call(
        functools.partial(_proj_ln_kernel, c_true=C, c_pad=Cp),
        out_shape=jax.ShapeDtypeStruct((M, Cp), out_dtype),
        grid_spec=pltpu.PrefetchScalarGridSpec(
            num_scalar_prefetch=0,
            grid=grid,
            in_specs=[
                pl.BlockSpec((TM, K), lambda i: (i, 0)),    # patch rows: pipelined over M
                pl.BlockSpec((K, Cp), lambda i: (0, 0)),    # conv weight: VMEM-resident
                pl.BlockSpec((8, Cp), lambda i: (0, 0)),    # bias/gamma/beta/mask: resident
            ],
            out_specs=pl.BlockSpec((TM, Cp), lambda i: (i, 0)),
        ),
        compiler_params=pltpu.CompilerParams(
            dimension_semantics=("parallel",),
            vmem_limit_bytes=vmem_limit,
        ),
        cost_estimate=cost,
    )(p2d, w2d, prm)

    if Cp != C:
        y = y[:, :C]
    y = y.reshape(B, N, C)

    side = int(math.isqrt(N))
    assert side * side == N, "OverlapPatchEmbed assumes a square token grid"
    # Reproduce torch.reshape((B, N, C) -> (B, C, side, side)) exactly: a *raw*
    # reshape (not a transpose), matching the original module's forward.
    return jnp.reshape(y, (B, C, side, side))


# -----------------------------------------------------------------------------
# Pure-JAX reference (conv + flatten/transpose + LayerNorm + raw reshape).
# -----------------------------------------------------------------------------
def _reference(x, conv_w, conv_b, ln_w, ln_b, patch_size, stride):
    pad = patch_size // 2
    y = jax.lax.conv_general_dilated(
        x, conv_w, window_strides=(stride, stride),
        padding=((pad, pad), (pad, pad)),
        dimension_numbers=("NCHW", "OIHW", "NCHW"),
    )
    y = y + conv_b[None, :, None, None]
    B, C, Ho, Wo = y.shape
    y = jnp.transpose(y.reshape(B, C, Ho * Wo), (0, 2, 1))      # (B, N, C)
    mean = y.mean(-1, keepdims=True)
    var = ((y - mean) ** 2).mean(-1, keepdims=True)
    y = (y - mean) * jax.lax.rsqrt(var + LN_EPS) * ln_w + ln_b
    side = int(math.isqrt(Ho * Wo))
    return jnp.reshape(y, (B, C, side, side))


if __name__ == "__main__":
    # Small shapes consistent with the module:
    #   img_size=16, patch_size=7, stride=4 -> H'=W'=4, N=16 (perfect square)
    B, Cin, HW = 2, 4, 16
    patch_size, stride, out_dim = 7, 4, 32

    key = jax.random.PRNGKey(0)
    k_x, k_w = jax.random.split(key)

    x = jax.random.normal(k_x, (B, Cin, HW, HW), dtype=jnp.float32)

    # Deterministic params mirroring _init_weights:
    #   conv weight ~ N(0, sqrt(2/fan_out)), conv bias = 0, LN weight = 1, bias = 0
    fan_out = patch_size * patch_size * out_dim
    conv_w = jax.random.normal(
        k_w, (out_dim, Cin, patch_size, patch_size), dtype=jnp.float32
    ) * math.sqrt(2.0 / fan_out)
    conv_b = jnp.zeros((out_dim,), dtype=jnp.float32)
    ln_w = jnp.ones((out_dim,), dtype=jnp.float32)
    ln_b = jnp.zeros((out_dim,), dtype=jnp.float32)

    fn = jax.jit(
        functools.partial(overlap_patch_embed, patch_size=patch_size, stride=stride)
    )
    out = jax.block_until_ready(fn(x, conv_w, conv_b, ln_w, ln_b))
    assert out.shape == (B, out_dim, 4, 4), out.shape

    ref = jax.block_until_ready(
        _reference(x, conv_w, conv_b, ln_w, ln_b, patch_size, stride)
    )
    max_err = float(jnp.max(jnp.abs(out - ref)))
    assert jnp.allclose(out, ref, atol=5e-2, rtol=5e-2), max_err

    print("KERNEL_OK")
</pallas_src>

<mosaic_0001>
module attributes {stable_mosaic.version = 11 : i64} {
  func.func @_proj_ln_kernel(%arg0: i32, %arg1: memref<16x196xbf16, #tpu.memory_space<vmem>>, %arg2: memref<196x128xbf16, #tpu.memory_space<vmem>>, %arg3: memref<8x128xf32, #tpu.memory_space<vmem>>, %arg4: memref<16x128xf32, #tpu.memory_space<vmem>>) attributes {dimension_semantics = [#tpu.dimension_semantics<parallel>], iteration_bounds = array<i64: 2>, scalar_prefetch = 0 : i64, scratch_operands = 0 : i64, tpu.core_type = #tpu.core_type<tc>, window_params = [{transform_indices = @transform_0, window_bounds = array<i64: 16, 196>}, {pipeline_mode = #tpu.pipeline_mode<synchronous>, transform_indices = @transform_1, window_bounds = array<i64: 196, 128>}, {pipeline_mode = #tpu.pipeline_mode<synchronous>, transform_indices = @transform_2, window_bounds = array<i64: 8, 128>}, {transform_indices = @transform_3, window_bounds = array<i64: 16, 128>}]} {
    %c0 = arith.constant 0 : index
    %c0_0 = arith.constant 0 : index
    %0 = vector.load %arg1[%c0, %c0_0] : memref<16x196xbf16, #tpu.memory_space<vmem>>, vector<16x196xbf16>
    %c0_1 = arith.constant 0 : index
    %c0_2 = arith.constant 0 : index
    %1 = vector.load %arg2[%c0_1, %c0_2] : memref<196x128xbf16, #tpu.memory_space<vmem>>, vector<196x128xbf16>
    %cst = arith.constant dense<0.000000e+00> : vector<16x128xf32>
    %2 = tpu.matmul %0, %1, %cst {dimension_numbers = #tpu.dot_dimension_numbers<[1], [0], [0], [1], [0, 0, 1, 1], [], []>} : vector<16x196xbf16>, vector<196x128xbf16>, vector<16x128xf32> -> vector<16x128xf32>
    %c0_3 = arith.constant 0 : index
    %c0_4 = arith.constant 0 : index
    %3 = vector.load %arg3[%c0_3, %c0_4] : memref<8x128xf32, #tpu.memory_space<vmem>>, vector<1x128xf32>
    %4 = vector.broadcast %3 : vector<1x128xf32> to vector<16x128xf32>
    %5 = arith.addf %2, %4 : vector<16x128xf32>
    %cst_5 = arith.constant dense<0.000000e+00> : vector<16xf32>
    %6 = vector.multi_reduction <add>, %5, %cst_5 [1] : vector<16x128xf32> to vector<16xf32>
    %7 = vector.shape_cast %6 : vector<16xf32> to vector<16x1xf32>
    %cst_6 = arith.constant 3.125000e-02 : f32
    %8 = vector.broadcast %cst_6 : f32 to vector<16x1xf32>
    %9 = arith.mulf %7, %8 : vector<16x1xf32>
    %c3 = arith.constant 3 : index
    %c0_7 = arith.constant 0 : index
    %10 = vector.load %arg3[%c3, %c0_7] : memref<8x128xf32, #tpu.memory_space<vmem>>, vector<1x128xf32>
    %11 = vector.broadcast %9 : vector<16x1xf32> to vector<16x128xf32>
    %12 = vector.broadcast %10 : vector<1x128xf32> to vector<16x128xf32>
    %13 = arith.mulf %11, %12 : vector<16x128xf32>
    %14 = arith.subf %5, %13 : vector<16x128xf32>
    %15 = arith.mulf %14, %14 : vector<16x128xf32>
    %cst_8 = arith.constant dense<0.000000e+00> : vector<16xf32>
    %16 = vector.multi_reduction <add>, %15, %cst_8 [1] : vector<16x128xf32> to vector<16xf32>
    %17 = vector.shape_cast %16 : vector<16xf32> to vector<16x1xf32>
    %cst_9 = arith.constant 3.125000e-02 : f32
    %18 = vector.broadcast %cst_9 : f32 to vector<16x1xf32>
    %19 = arith.mulf %17, %18 : vector<16x1xf32>
    %cst_10 = arith.constant 9.99999974E-6 : f32
    %20 = vector.broadcast %cst_10 : f32 to vector<16x1xf32>
    %21 = arith.addf %19, %20 : vector<16x1xf32>
    %22 = math.rsqrt %21 : vector<16x1xf32>
    %23 = vector.broadcast %22 : vector<16x1xf32> to vector<16x128xf32>
    %24 = arith.mulf %14, %23 : vector<16x128xf32>
    %c1 = arith.constant 1 : index
    %c0_11 = arith.constant 0 : index
    %25 = vector.load %arg3[%c1, %c0_11] : memref<8x128xf32, #tpu.memory_space<vmem>>, vector<1x128xf32>
    %26 = vector.broadcast %25 : vector<1x128xf32> to vector<16x128xf32>
    %27 = arith.mulf %24, %26 : vector<16x128xf32>
    %c2 = arith.constant 2 : index
    %c0_12 = arith.constant 0 : index
    %28 = vector.load %arg3[%c2, %c0_12] : memref<8x128xf32, #tpu.memory_space<vmem>>, vector<1x128xf32>
    %29 = vector.broadcast %28 : vector<1x128xf32> to vector<16x128xf32>
    %30 = arith.addf %27, %29 : vector<16x128xf32>
    %c0_13 = arith.constant 0 : index
    %c0_14 = arith.constant 0 : index
    %31 = vector.load %arg4[%c0_13, %c0_14] : memref<16x128xf32, #tpu.memory_space<vmem>>, vector<16x128xf32>
    tpu.vector_store %arg4[%c0_13, %c0_14], %30 {strides = array<i32>} : memref<16x128xf32, #tpu.memory_space<vmem>>, vector<16x128xf32>,
    return
  }
  func.func @transform_0(%arg0: i32) -> (i32, i32) {
    %c0_i32 = arith.constant 0 : i32
    %c0_i32_0 = arith.constant 0 : i32
    return %arg0, %c0_i32 : i32, i32
  }
  func.func @transform_1(%arg0: i32) -> (i32, i32) {
    %c0_i32 = arith.constant 0 : i32
    %c0_i32_0 = arith.constant 0 : i32
    %c0_i32_1 = arith.constant 0 : i32
    return %c0_i32, %c0_i32_0 : i32, i32
  }
  func.func @transform_2(%arg0: i32) -> (i32, i32) {
    %c0_i32 = arith.constant 0 : i32
    %c0_i32_0 = arith.constant 0 : i32
    %c0_i32_1 = arith.constant 0 : i32
    return %c0_i32, %c0_i32_0 : i32, i32
  }
  func.func @transform_3(%arg0: i32) -> (i32, i32) {
    %c0_i32 = arith.constant 0 : i32
    %c0_i32_0 = arith.constant 0 : i32
    return %arg0, %c0_i32 : i32, i32
  }
}

</mosaic_0001>

<llo_original>
// kernel: overlap_patch_embed.1
$region0: #{overlap_patch_embed.1}
  #allocation0 [shape = 'u32[]', space=smem, size = 0x4, offset = 0x4, fixed_abs, tag = 'smem constant byte address 0x4 - core index']
  #allocation1 [shape = 'u32[144,128]{1,0:T(1,128)}', space=vmem, size = 0x12000, scoped, tag = 'internal scratch']
  %s0 = inlined_call_operand.vmem [shape: bf16[32,196], index: 0, kind: input, shape index: {}]
  %s1 = inlined_call_operand.vmem [shape: bf16[196,128], index: 1, kind: input, shape index: {}]
  %s2 = inlined_call_operand.vmem [shape: f32[8,128], index: 2, kind: input, shape index: {}]
  %s3 = inlined_call_operand.vmem [shape: f32[32,128], index: 3, kind: output, shape index: {}]
  %s4 = sld [smem:[#allocation0]]
  $region45: #{overlap_patch_embed.1} parent=0
    _
  %s6 = ssub.s32 1, %s4
  %s7 = scalar_select 0, %s6, %s4
  loop: start=0, step=1, limit=4
  $region2: #{overlap_patch_embed.1} parent=0 // loop_pre_header
    _
  $region3: #{overlap_patch_embed.1} parent=0 // loop_header
    %s9 = sphi 0, %s13
    %p10 = scmp.ge.s32.totalorder %s9, 4
    %s19 = sphi 0, %s21
    %s22 = sphi 0, %s19
    %s23 = sphi 0, %s22
    %s39 = sphi 0, %s23
    %s43 = sphi 0, %s43
    %s45 = sphi 0, %s43
    %s46 = sphi 0, %s45
    %s60 = sphi 0, %s46
    %s64 = sphi 0, %s64
    %s66 = sphi 0, %s64
    %s67 = sphi 0, %s66
    %s81 = sphi 0, %s67
    %s87 = sphi 0, %s89
    %s90 = sphi 0, %s87
    %s91 = sphi 0, %s90
    %s107 = sphi 0, %s91
  $region4: #{overlap_patch_embed.1} parent=0 // loop_header_branch
    %12 = sbr.rel (%p10) target = $region8
  $region5: #{overlap_patch_embed.1} parent=0 // loop_body
    %s14 = ssub.s32 %s9, 1
    %s15 = ssub.s32 %s9, 2
    %s16 = sadd.s32 %s9, 1
    %s17 = ssub.s32 %s9, %s16
    %p18 = scmp.eq.s32.totalorder %s17, 0
    %s20 = sadd.s32 %s19, 1
    %s21 = scalar_select %p18, %s19, %s20
    %p24 = pneg %p18
    %p25 = scmp.eq.s32.totalorder %s9, 1
    %p26 = por %p24, %p25
    %p27 = scmp.ne.s32.totalorder %s19, %s22
    %p28 = scmp.eq.s32.totalorder %s9, 0
    %p29 = por %p27, %p28
    %p30 = scmp.ne.s32.totalorder %s19, %s22
    %p31 = scmp.eq.s32.totalorder %s14, 1
    %p32 = por %p30, %p31
    %p33 = scmp.ne.s32.totalorder %s22, %s23
    %p34 = scmp.eq.s32.totalorder %s14, 0
    %p35 = por %p33, %p34
    %p36 = scmp.ne.s32.totalorder %s22, %s23
    %p37 = scmp.eq.s32.totalorder %s15, 1
    %p38 = por %p36, %p37
    %p40 = scmp.ne.s32.totalorder %s23, %s39
    %p41 = scmp.eq.s32.totalorder %s15, 0
    %p42 = por %p40, %p41
    %s44 = sadd.s32 %s43, 1
    %p47 = scmp.eq.s32.totalorder %s9, 1
    %p48 = scmp.ne.s32.totalorder %s43, %s45
    %p49 = scmp.eq.s32.totalorder %s9, 0
    %p50 = por %p48, %p49
    %p51 = scmp.ne.s32.totalorder %s43, %s45
    %p52 = scmp.eq.s32.totalorder %s14, 1
    %p53 = por %p51, %p52
    %p54 = scmp.ne.s32.totalorder %s45, %s46
    %p55 = scmp.eq.s32.totalorder %s14, 0
    %p56 = por %p54, %p55
    %p57 = scmp.ne.s32.totalorder %s45, %s46
    %p58 = scmp.eq.s32.totalorder %s15, 1
    %p59 = por %p57, %p58
    %p61 = scmp.ne.s32.totalorder %s46, %s60
    %p62 = scmp.eq.s32.totalorder %s15, 0
    %p63 = por %p61, %p62
    %s65 = sadd.s32 %s64, 1
    %p68 = scmp.eq.s32.totalorder %s9, 1
    %p69 = scmp.ne.s32.totalorder %s64, %s66
    %p70 = scmp.eq.s32.totalorder %s9, 0
    %p71 = por %p69, %p70
    %p72 = scmp.ne.s32.totalorder %s64, %s66
    %p73 = scmp.eq.s32.totalorder %s14, 1
    %p74 = por %p72, %p73
    %p75 = scmp.ne.s32.totalorder %s66, %s67
    %p76 = scmp.eq.s32.totalorder %s14, 0
    %p77 = por %p75, %p76
    %p78 = scmp.ne.s32.totalorder %s66, %s67
    %p79 = scmp.eq.s32.totalorder %s15, 1
    %p80 = por %p78, %p79
    %p82 = scmp.ne.s32.totalorder %s67, %s81
    %p83 = scmp.eq.s32.totalorder %s15, 0
    %p84 = por %p82, %p83
    %s85 = ssub.s32 %s9, %s16
    %p86 = scmp.eq.s32.totalorder %s85, 0
    %s88 = sadd.s32 %s87, 1
    %s89 = scalar_select %p86, %s87, %s88
    %p92 = pneg %p86
    %p93 = scmp.eq.s32.totalorder %s9, 1
    %p94 = por %p92, %p93
    %p95 = scmp.ne.s32.totalorder %s87, %s90
    %p96 = scmp.eq.s32.totalorder %s9, 0
    %p97 = por %p95, %p96
    %p98 = scmp.ne.s32.totalorder %s87, %s90
    %p99 = scmp.eq.s32.totalorder %s14, 1
    %p100 = por %p98, %p99
    %p101 = scmp.ne.s32.totalorder %s90, %s91
    %p102 = scmp.eq.s32.totalorder %s14, 0
    %p103 = por %p101, %p102
    %p104 = scmp.ne.s32.totalorder %s90, %s91
    %p105 = scmp.eq.s32.totalorder %s15, 1
    %p106 = por %p104, %p105
    %p108 = scmp.ne.s32.totalorder %s91, %s107
    %p109 = scmp.eq.s32.totalorder %s15, 0
    %p110 = por %p108, %p109
    %p111 = scmp.le.s32.totalorder 1, %s9
    %p112 = scmp.lt.s32.totalorder %s9, 3
    %p113 = pnand %p111, %p112
    %p114 = pneg %p113
    // Predicated region
    $region9: #{overlap_patch_embed.1} parent=5 // pred_check
      _
    $region10: #{overlap_patch_embed.1} parent=5 // pred_check_branch
      %116 = sbr.rel (%p113) target = $region12
    $region11: #{overlap_patch_embed.1} parent=5 // pred_region
      %s117 = ssub.s32 %s9, 1
      // Predicated region
      $region13: #{overlap_patch_embed.1} parent=11 // pred_check
        %p118 = pneg %p56
      $region14: #{overlap_patch_embed.1} parent=11 // pred_check_branch
        %120 = sbr.rel (%p118) target = $region16
      $region15: #{overlap_patch_embed.1} parent=11 // pred_region
        _
      $region16: #{overlap_patch_embed.1} parent=11 // pred_fallthru
        _
      // Predicated region
      $region17: #{overlap_patch_embed.1} parent=11 // pred_check
        %p121 = pneg %p77
      $region18: #{overlap_patch_embed.1} parent=11 // pred_check_branch
        %123 = sbr.rel (%p121) target = $region20
      $region19: #{overlap_patch_embed.1} parent=11 // pred_region
        _
      $region20: #{overlap_patch_embed.1} parent=11 // pred_fallthru
        _
    $region12: #{overlap_patch_embed.1} parent=5 // pred_fallthru
      _
    %p124 = scmp.lt.s32.totalorder %s9, 2
    // Predicated region
    $region21: #{overlap_patch_embed.1} parent=5 // pred_check
      %p125 = pneg %p124
    $region22: #{overlap_patch_embed.1} parent=5 // pred_check_branch
      %127 = sbr.rel (%p125) target = $region24
    $region23: #{overlap_patch_embed.1} parent=5 // pred_region
      // Predicated region
      $region25: #{overlap_patch_embed.1} parent=23 // pred_check
        %p128 = pneg %p29
      $region26: #{overlap_patch_embed.1} parent=23 // pred_check_branch
        %130 = sbr.rel (%p128) target = $region28
      $region27: #{overlap_patch_embed.1} parent=23 // pred_region
        %s131 = smul.u32 2, %s9
        %p132 = scmp.lt.s32.totalorder %s131, 3
        %s133 = scalar_select %p132, %s131, 3
        %s134 = smul.addr %s133, 2
        %s135 = smul.addr %s134, 4
        %s136 = scalar_lea.vmem %s0, %s135
        %s137 = smul.u32 2, %s9
      $region28: #{overlap_patch_embed.1} parent=23 // pred_fallthru
        _
    $region24: #{overlap_patch_embed.1} parent=5 // pred_fallthru
      _
    %p138 = scmp.le.s32.totalorder 1, %s9
    %p139 = scmp.lt.s32.totalorder %s9, 3
    %p140 = pnand %p138, %p139
    %p141 = pneg %p140
    // Predicated region
    $region29: #{overlap_patch_embed.1} parent=5 // pred_check
      _
    $region30: #{overlap_patch_embed.1} parent=5 // pred_check_branch
      %143 = sbr.rel (%p140) target = $region32
    $region31: #{overlap_patch_embed.1} parent=5 // pred_region
      %s144 = ssub.s32 %s9, 1
      %s145 = smul.u32 2, %s14
      %p146 = scmp.lt.s32.totalorder %s145, 3
      %s147 = scalar_select %p146, %s145, 3
      %s148 = smul.addr %s147, 2
      %s149 = smul.addr %s148, 4
      %s150 = scalar_lea.vmem %s0, %s149
      %p151 = pneg %p35
      %p152 = pneg %p32
      %p153 = pneg %p56
      %p154 = pneg %p53
      %p155 = pneg %p77
      %p156 = pneg %p74
      %p157 = pneg %p103
      %p158 = pneg %p100
      %s159 = smul.u32 2, %s14
      %p160 = scmp.lt.s32.totalorder %s159, 3
      %s161 = scalar_select %p160, %s159, 3
      %s162 = smul.addr %s161, 8
      %s163 = scalar_lea.vmem %s3, %s162
      %s164 = smul.u32 2, %s14
      %p165 = scmp.lt.s32.totalorder %s164, 3
      %s166 = scalar_select %p165, %s164, 3
      %s167 = smul.addr %s166, 2
      %s168 = smul.addr %s167, 4
      %s169 = scalar_lea.vmem %s0, %s168
      %s170 = smul.u32 2, %s14
      %s171 = smul.u32 2, %s14
      %p172 = scmp.lt.s32.totalorder %s171, 3
      %s173 = scalar_select %p172, %s171, 3
      %s174 = smul.addr %s173, 8
      %s175 = scalar_lea.vmem %s3, %s174
      %s176 = smul.u32 2, %s14
      %v178 = vld [vmem:[%s169] sm:$0xff]
      %v179 = vld [vmem:[%s169 + $0x8] sm:$0xff]
      %v180 = vld [vmem:[%s1] sm:$0xf]
      %v181 = vld [vmem:[%s1 + $0x4] sm:$0xf]
      %v182 = vld [vmem:[%s1 + $0x8] sm:$0xf]
      %v183 = vld [vmem:[%s1 + $0xc] sm:$0xf]
      %v184 = vld [vmem:[%s1 + $0x10] sm:$0xf]
      %v185 = vld [vmem:[%s1 + $0x14] sm:$0xf]
      %v186 = vld [vmem:[%s1 + $0x18] sm:$0xf]
      %v187 = vld [vmem:[%s1 + $0x1c] sm:$0xf]
      %v188 = vld [vmem:[%s1 + $0x20] sm:$0xf]
      %v189 = vld [vmem:[%s1 + $0x24] sm:$0xf]
      %v190 = vld [vmem:[%s1 + $0x28] sm:$0xf]
      %v191 = vld [vmem:[%s1 + $0x2c] sm:$0xf]
      %v192 = vld [vmem:[%s1 + $0x30] sm:$0xf]
      %v193 = vld [vmem:[%s1 + $0x34] sm:$0xf]
      %v194 = vld [vmem:[%s1 + $0x38] sm:$0xf]
      %v195 = vld [vmem:[%s1 + $0x3c] sm:$0xf]
      %v196 = vld [vmem:[%s1 + $0x40] sm:$0xf]
      %v197 = vld [vmem:[%s1 + $0x44] sm:$0xf]
      %v198 = vld [vmem:[%s1 + $0x48] sm:$0xf]
      %v199 = vld [vmem:[%s1 + $0x4c] sm:$0xf]
      %v200 = vld [vmem:[%s1 + $0x50] sm:$0xf]
      %v201 = vld [vmem:[%s1 + $0x54] sm:$0xf]
      %v202 = vld [vmem:[%s1 + $0x58] sm:$0xf]
      %v203 = vld [vmem:[%s1 + $0x5c] sm:$0xf]
      %v204 = vld [vmem:[%s1 + $0x60] sm:$0x3]
      %v205 = vld [vmem:[%s2] sm:$0x1]
      %v206 = vlaneseq
      %v207 = vshrl.u32 %v206, 7
      %v208 = vsub.s32 0, %v207
      %v209 = vrot.slane %v205, %v208
      %v212 = vunpack.c.l.b16 %v178
      %v213 = vunpack.c.h.b16 %v178
      %v214 = vunpack.c.l.b16 %v179
      %v215 = vunpack.c.h.b16 %v179
      %v216 = vpack.c.b16 %v214, %v212
      %v217 = vpack.c.b16 %v215, %v213
      %v244 = vunpack.c.l.b16 %v180
      %v245 = vunpack.c.l.b16 %v181
      %v246 = vunpack.c.l.b16 %v182
      %v247 = vunpack.c.l.b16 %v183
      %v248 = vunpack.c.l.b16 %v184
      %v249 = vunpack.c.l.b16 %v185
      %v250 = vunpack.c.l.b16 %v186
      %v251 = vunpack.c.l.b16 %v187
      %v252 = vunpack.c.l.b16 %v188
      %v253 = vunpack.c.l.b16 %v189
      %v254 = vunpack.c.l.b16 %v190
      %v255 = vunpack.c.l.b16 %v191
      %v256 = vunpack.c.l.b16 %v192
      %v257 = vunpack.c.l.b16 %v193
      %v258 = vunpack.c.l.b16 %v194
      %v259 = vunpack.c.l.b16 %v195
      %v260 = vunpack.c.l.b16 %v196
      %v261 = vunpack.c.l.b16 %v197
      %v262 = vunpack.c.l.b16 %v198
      %v263 = vunpack.c.l.b16 %v199
      %v264 = vunpack.c.l.b16 %v200
      %v265 = vunpack.c.l.b16 %v201
      %v266 = vunpack.c.l.b16 %v202
      %v267 = vunpack.c.l.b16 %v203
      %v268 = vunpack.c.l.b16 %v204
      %v269 = vpack.c.b16 %v245, %v244
      %v270 = vpack.c.b16 %v247, %v246
      %v271 = vpack.c.b16 %v249, %v248
      %v272 = vpack.c.b16 %v251, %v250
      %v273 = vpack.c.b16 %v253, %v252
      %v274 = vpack.c.b16 %v255, %v254
      %v275 = vpack.c.b16 %v257, %v256
      %v276 = vpack.c.b16 %v259, %v258
      %v277 = vpack.c.b16 %v261, %v260
      %v278 = vpack.c.b16 %v263, %v262
      %v279 = vpack.c.b16 %v265, %v264
      %v280 = vpack.c.b16 %v267, %v266
      %v281 = vpack.c.b16 %v268, %v268
      %vm294 = vcmask 556032
      %v296 = vsel %vm294, %v217, 0
      %vm298 = vcmask 1041408
      %v300 = vsel %vm298, %v281, 0
      %302 = vmatprep.subr.bf16.mxu0 0
      %303 = vmatpush1.bf16.msra.mxu0 %v276
      %304 = vmatprep.subr.bf16.mxu0 0
      %305 = vmatpush1.bf16.msra.mxu0 %v275
      %306 = vmatprep.subr.bf16.mxu0 0
      %307 = vmatpush1.bf16.msra.mxu0 %v274
      %308 = vmatprep.subr.bf16.mxu0 0
      %309 = vmatpush1.bf16.msra.mxu0 %v273
      %310 = vmatprep.subr.bf16.mxu0 0
      %311 = vmatpush1.bf16.msra.mxu0 %v272
      %312 = vmatprep.subr.bf16.mxu0 0
      %313 = vmatpush1.bf16.msra.mxu0 %v271
      %314 = vmatprep.subr.bf16.mxu0 0
      %315 = vmatpush1.bf16.msra.mxu0 %v270
      %316 = vmatprep.subr.bf16.mxu0 0
      %317 = vmatpush1.bf16.msra.mxu0 %v269
      %318 = vmatprep.subr.bf16.mxu0 0
      %319 = vmatpush2.bf16.msra.mxu0 0
      %320 = vmatprep.subr.bf16.mxu0 0
      %321 = vmatpush2.bf16.msra.mxu0 0
      %322 = vmatprep.subr.bf16.mxu0 0
      %323 = vmatpush2.bf16.msra.mxu0 0
      %324 = vmatprep.subr.bf16.mxu0 0
      %325 = vmatpush2.bf16.msra.mxu0 %v300
      %326 = vmatprep.subr.bf16.mxu0 0
      %327 = vmatpush2.bf16.msra.mxu0 %v280
      %328 = vmatprep.subr.bf16.mxu0 0
      %329 = vmatpush2.bf16.msra.mxu0 %v279
      %330 = vmatprep.subr.bf16.mxu0 0
      %331 = vmatpush2.bf16.msra.mxu0 %v278
      %332 = vmatprep.subr.bf16.mxu0 0
      %333 = vmatpush2.bf16.msra.mxu0 %v277
      %334 = vmatprep.mubr.bf16.mxu0 %v296
      %335 = vmatmul.mubr.bf16.gmra.mxu0 %v216
      %v336 = vpop.f32.mrf.mxu0
      %v337 = vadd.f32 %v209, %v336
      %v338 = vpop.f32.mrf.mxu0
      %v339 = vpop.f32.mrf.mxu0
      %v340 = vadd.f32 %v209, %v339
      %v341 = vpop.f32.mrf.mxu0
      %342 = vdwg.mxu0
      %343 = vadd.xlane.f32.xlu0 %v337
      %v344 = vpop.xlane.xlu0 %343
      %345 = vadd.xlane.f32.xlu0 %v340
      %v346 = vpop.xlane.xlu0 %345
      %v347 = vmul.f32 %v344, 0.03125
      %v348 = vmul.f32 %v346, 0.03125
      %v349 = vld [vmem:[%s2 + $0x3] sm:$0x1]
      %v350 = vlaneseq
      %v351 = vshrl.u32 %v350, 7
      %v352 = vsub.s32 0, %v351
      %v353 = vrot.slane %v349, %v352
      %v354 = vmul.f32 %v347, %v353
      %v355 = vmul.f32 %v348, %v353
      %v356 = vsub.f32 %v337, %v354
      %v357 = vsub.f32 %v340, %v355
      %v358 = vmul.f32 %v356, %v356
      %v359 = vmul.f32 %v357, %v357
      %360 = vadd.xlane.f32.xlu0 %v358
      %v361 = vpop.xlane.xlu0 %360
      %362 = vadd.xlane.f32.xlu0 %v359
      %v363 = vpop.xlane.xlu0 %362
      %v364 = vmul.f32 %v361, 0.03125
      %v365 = vmul.f32 %v363, 0.03125
      %v366 = vadd.f32 %v364, 1e-05
      %v367 = vadd.f32 %v365, 1e-05
      %v368 = vrsqrt.pop %v366
      %v369 = vrsqrt.pop %v367
      %v370 = vmul.f32 %v356, %v368
      %v371 = vmul.f32 %v357, %v369
      %v372 = vld [vmem:[%s2 + $0x1] sm:$0x1]
      %v373 = vlaneseq
      %v374 = vshrl.u32 %v373, 7
      %v375 = vsub.s32 0, %v374
      %v376 = vrot.slane %v372, %v375
      %v377 = vmul.f32 %v370, %v376
      %v378 = vmul.f32 %v371, %v376
      %v379 = vld [vmem:[%s2 + $0x2] sm:$0x1]
      %v380 = vlaneseq
      %v381 = vshrl.u32 %v380, 7
      %v382 = vsub.s32 0, %v381
      %v383 = vrot.slane %v379, %v382
      %v384 = vadd.f32 %v377, %v383
      %v385 = vadd.f32 %v378, %v383
      %386 = vst [vmem:[%s175] sm:$0xff] %v384
      %387 = vst [vmem:[%s175 + $0x8] sm:$0xff] %v385
      %s388 = smul.u32 2, %s14
      %p389 = scmp.lt.s32.totalorder %s388, 3
      %s390 = scalar_select %p389, %s388, 3
      %s391 = smul.addr %s390, 8
      %s392 = scalar_lea.vmem %s3, %s391
      // Predicated region
      $region33: #{overlap_patch_embed.1} parent=31 // pred_check
        %p393 = pneg %p100
      $region34: #{overlap_patch_embed.1} parent=31 // pred_check_branch
        %395 = sbr.rel (%p393) target = $region36
      $region35: #{overlap_patch_embed.1} parent=31 // pred_region
        %s396 = smul.u32 2, %s14
      $region36: #{overlap_patch_embed.1} parent=31 // pred_fallthru
        _
    $region32: #{overlap_patch_embed.1} parent=5 // pred_fallthru
      _
    %p397 = scmp.le.s32.totalorder 2, %s9
    // Predicated region
    $region37: #{overlap_patch_embed.1} parent=5 // pred_check
      %p398 = pneg %p397
    $region38: #{overlap_patch_embed.1} parent=5 // pred_check_branch
      %400 = sbr.rel (%p398) target = $region40
    $region39: #{overlap_patch_embed.1} parent=5 // pred_region
      %s401 = ssub.s32 %s9, 2
      // Predicated region
      $region41: #{overlap_patch_embed.1} parent=39 // pred_check
        %p402 = pneg %p106
      $region42: #{overlap_patch_embed.1} parent=39 // pred_check_branch
        %404 = sbr.rel (%p402) target = $region44
      $region43: #{overlap_patch_embed.1} parent=39 // pred_region
        %s405 = smul.u32 2, %s15
        %p406 = scmp.lt.s32.totalorder %s405, 3
        %s407 = scalar_select %p406, %s405, 3
        %s408 = smul.addr %s407, 8
        %s409 = scalar_lea.vmem %s3, %s408
      $region44: #{overlap_patch_embed.1} parent=39 // pred_fallthru
        _
    $region40: #{overlap_patch_embed.1} parent=5 // pred_fallthru
      _
  $region6: #{overlap_patch_embed.1} parent=0 // loop_footer
    %s13 = sadd.s32 1, %s9
  $region7: #{overlap_patch_embed.1} parent=0 // loop_footer_branch
    %8 = sbr.rel target = $region3
  $region8: #{overlap_patch_embed.1} parent=0 // loop_exit
    _

</llo_original>
